<compile_context>
chip_gen: v7x
topology: tpu7x:2x2x1
jax: 0.10.0
libtpu: 0.0.40
codegen_flags: <defaults>
</compile_context>

<pallas_src>
import functools

import jax
import jax.numpy as jnp
from jax import lax
from jax.experimental import pallas as pl
from jax.experimental.pallas import tpu as pltpu

BN_EPS = 1e-5
LANE = 128


def _make_mlp_kernel(nhidden: int):
    """Fused forward with (features, batch) activations.

    h0 = relu(W0^T @ x_t + b0);  hl = relu(Wl^T @ h + bl);  out = wf @ h + bf.
    All matmuls are bf16 x bf16 -> f32; bias/ReLU math stays f32.
    """

    if nhidden > 0:

        def kernel(x_ref, w0_ref, b0_ref, ws_ref, bs_ref, wf_ref, bf_ref, out_ref):
            h = jnp.maximum(
                jnp.dot(w0_ref[...], x_ref[...],
                        preferred_element_type=jnp.float32) + b0_ref[...],
                0.0)
            for l in range(nhidden):                       # static unroll, tiny dims
                h = jnp.maximum(
                    jnp.dot(ws_ref[l], h.astype(jnp.bfloat16),
                            preferred_element_type=jnp.float32) + bs_ref[l],
                    0.0)
            out = jnp.dot(wf_ref[...], h.astype(jnp.bfloat16),
                          preferred_element_type=jnp.float32)
            out_ref[...] = (out + bf_ref[...]).astype(out_ref.dtype)

        return kernel

    def kernel(x_ref, w0_ref, b0_ref, wf_ref, bf_ref, out_ref):
        h = jnp.maximum(
            jnp.dot(w0_ref[...], x_ref[...],
                    preferred_element_type=jnp.float32) + b0_ref[...],
            0.0)
        out = jnp.dot(wf_ref[...], h.astype(jnp.bfloat16),
                      preferred_element_type=jnp.float32)
        out_ref[...] = (out + bf_ref[...]).astype(out_ref.dtype)

    return kernel


def init_params(key, nfinglayers, fingdim, fingernode, fingerout):
    """Raw parameters mirroring the PyTorch module (weights stored as (in, out))."""
    params = []
    k = key
    in_dim = fingdim
    for _ in range(nfinglayers):
        k, kw, kb, kg, kbe, km, kv = jax.random.split(k, 7)
        w = jax.random.normal(kw, (in_dim, fingernode), jnp.float32) * 0.05
        b = jax.random.normal(kb, (1, fingernode), jnp.float32) * 0.01
        gamma = 1.0 + 0.1 * jax.random.normal(kg, (1, fingernode), jnp.float32)
        beta = 0.1 * jax.random.normal(kbe, (1, fingernode), jnp.float32)
        mean = 0.1 * jax.random.normal(km, (1, fingernode), jnp.float32)
        var = jnp.abs(jax.random.normal(kv, (1, fingernode), jnp.float32)) + 0.5
        params += [w, b, gamma, beta, mean, var]
        in_dim = fingernode

    k, kw, kb, kw2, kb2 = jax.random.split(k, 5)
    w_out = jax.random.normal(kw, (fingernode, fingerout), jnp.float32) * 0.05
    b_out = jax.random.normal(kb, (1, fingerout), jnp.float32) * 0.01
    w_pred = jax.random.normal(kw2, (fingerout, 1), jnp.float32) * 0.05
    b_pred = jax.random.normal(kb2, (1, 1), jnp.float32) * 0.01
    params += [w_out, b_out, w_pred, b_pred]
    return params


def fold_params(params, nfinglayers):
    """Host-side algebra (f32): fold eval BN into Linear, collapse the head,
    transpose for the (features, batch) kernel layout, cast weights to bf16.

    Returns (w0_t, b0, ws_t, bs, wf_row, bf):
      w0_t (node, fingdim) bf16, b0 (node, 1) f32
      ws_t (L-1, node, node) bf16, bs (L-1, node, 1) f32  (None when L == 1)
      wf_row (1, node) bf16, bf (1, 1) f32
    """
    folded_w_t, folded_b_col = [], []
    idx = 0
    for _ in range(nfinglayers):
        w, b, gamma, beta, mean, var = params[idx:idx + 6]
        idx += 6
        scale = gamma * lax.rsqrt(var + BN_EPS)              # (1, N)
        folded_w_t.append((w * scale).T)                     # (out, in)
        folded_b_col.append(((b - mean) * scale + beta).T)   # (out, 1)
    w_out, b_out, w_pred, b_pred = params[idx:idx + 4]
    wf_row = (w_out @ w_pred).T                              # (1, node)
    bf = b_out @ w_pred + b_pred                             # (1, 1)

    w0_t = folded_w_t[0].astype(jnp.bfloat16)
    b0 = folded_b_col[0]
    if nfinglayers > 1:
        ws_t = jnp.stack(folded_w_t[1:]).astype(jnp.bfloat16)   # (L-1, node, node)
        bs = jnp.stack(folded_b_col[1:])                        # (L-1, node, 1)
    else:
        ws_t = bs = None
    return w0_t, b0, ws_t, bs, wf_row.astype(jnp.bfloat16), bf


@functools.partial(jax.jit, static_argnames=("nfinglayers",))
def net_forward(x, folded, *, nfinglayers):
    w0_t, b0, ws_t, bs, wf, bf = folded
    batch, fingdim = x.shape
    fingernode = w0_t.shape[0]
    nhidden = nfinglayers - 1

    # Batch on the lane axis: pass x as (fingdim, batch), bf16 operands.
    x_t = x.T.astype(jnp.bfloat16)

    # Batch tile: multiple of 128 lanes, up to 4096 (footprint is ~1 MiB even
    # double-buffered, far under every generation's VMEM budget).  When the
    # batch spans >= 2 lane blocks, cap the tile so the "parallel" grid keeps
    # >= 2 steps (v7x has 2 TensorCores); prefer an even block count (256-wide
    # MXU on v6e/v7x; 128 still packs fully on v5e).
    n_blocks = pl.cdiv(batch, LANE)
    cap_blocks = 4096 // LANE
    if n_blocks >= 2:
        tb_blocks = min(cap_blocks, n_blocks // 2)
        if tb_blocks >= 2 and tb_blocks % 2:
            tb_blocks -= 1
    else:
        tb_blocks = 1
    tb = LANE * tb_blocks
    grid_n = pl.cdiv(batch, tb)          # no host-side padding of x

    resident2 = lambda i: (0, 0)         # weights resident across grid steps
    resident3 = lambda i: (0, 0, 0)

    in_specs = [
        pl.BlockSpec((fingdim, tb), lambda i: (0, i)),        # x_t (ragged last block OK)
        pl.BlockSpec((fingernode, fingdim), resident2),       # W0^T
        pl.BlockSpec((fingernode, 1), resident2),             # b0 column
    ]
    args = [x_t, w0_t, b0]
    if nhidden > 0:
        in_specs += [
            pl.BlockSpec((nhidden, fingernode, fingernode), resident3),
            pl.BlockSpec((nhidden, fingernode, 1), resident3),
        ]
        args += [ws_t, bs]
    in_specs += [
        pl.BlockSpec((1, fingernode), resident2),             # collapsed head row
        pl.BlockSpec((1, 1), resident2),
    ]
    args += [wf, bf]

    out_row = pl.pallas_call(
        _make_mlp_kernel(nhidden),
        out_shape=jax.ShapeDtypeStruct((1, grid_n * tb), jnp.float32),
        grid=(grid_n,),
        in_specs=in_specs,
        out_specs=pl.BlockSpec((1, tb), lambda i: (0, i)),    # lane-dense output row
        compiler_params=pltpu.CompilerParams(
            dimension_semantics=("parallel",),
            vmem_limit_bytes=32 * 1024 * 1024,
        ),
    )(*args)
    # Drop garbage columns from the ragged last block; back to (batch, 1).
    return out_row[0, :batch][:, None]


def reference_forward(x, params, nfinglayers):
    """Pure-JAX reference with the ORIGINAL (unfused, f32) math."""
    h = x.astype(jnp.float32)
    idx = 0
    for _ in range(nfinglayers):
        w, b, gamma, beta, mean, var = params[idx:idx + 6]
        idx += 6
        h = h @ w + b
        h = (h - mean) / jnp.sqrt(var + BN_EPS) * gamma + beta
        h = jnp.maximum(h, 0.0)
    w_out, b_out, w_pred, b_pred = params[idx:idx + 4]
    h = h @ w_out + b_out
    return h @ w_pred + b_pred


if __name__ == "__main__":
    # Small, forward-consistent shapes.
    nfinglayers = 2
    fingdim = 32
    fingernode = 32
    fingerout = 16
    batch = 8

    key = jax.random.PRNGKey(0)
    k_x, k_p = jax.random.split(key)
    x = jax.random.normal(k_x, (batch, fingdim), jnp.float32)
    params = init_params(k_p, nfinglayers, fingdim, fingernode, fingerout)
    folded = fold_params(params, nfinglayers)

    out = net_forward(x, folded, nfinglayers=nfinglayers)
    out = jax.block_until_ready(out)

    ref = reference_forward(x, params, nfinglayers)
    assert out.shape == (batch, 1), out.shape
    # bf16 operands vs f32 reference: tolerance loosened accordingly.
    assert jnp.allclose(out, ref, atol=1e-2, rtol=1e-2), (out, ref)

    print("KERNEL_OK")
</pallas_src>

<mosaic_0001>
module attributes {stable_mosaic.version = 11 : i64} {
  func.func @kernel(%arg0: i32, %arg1: memref<32x128xbf16, #tpu.memory_space<vmem>>, %arg2: memref<32x32xbf16, #tpu.memory_space<vmem>>, %arg3: memref<32x1xf32, #tpu.memory_space<vmem>>, %arg4: memref<1x32x32xbf16, #tpu.memory_space<vmem>>, %arg5: memref<1x32x1xf32, #tpu.memory_space<vmem>>, %arg6: memref<1x32xbf16, #tpu.memory_space<vmem>>, %arg7: memref<1x1xf32, #tpu.memory_space<vmem>>, %arg8: memref<1x128xf32, #tpu.memory_space<vmem>>) attributes {dimension_semantics = [#tpu.dimension_semantics<parallel>], iteration_bounds = array<i64: 1>, scalar_prefetch = 0 : i64, scratch_operands = 0 : i64, tpu.core_type = #tpu.core_type<tc>, window_params = [{transform_indices = @transform_0, window_bounds = array<i64: 32, 128>}, {pipeline_mode = #tpu.pipeline_mode<synchronous>, transform_indices = @transform_1, window_bounds = array<i64: 32, 32>}, {pipeline_mode = #tpu.pipeline_mode<synchronous>, transform_indices = @transform_2, window_bounds = array<i64: 32, 1>}, {pipeline_mode = #tpu.pipeline_mode<synchronous>, transform_indices = @transform_3, window_bounds = array<i64: 1, 32, 32>}, {pipeline_mode = #tpu.pipeline_mode<synchronous>, transform_indices = @transform_4, window_bounds = array<i64: 1, 32, 1>}, {pipeline_mode = #tpu.pipeline_mode<synchronous>, transform_indices = @transform_5, window_bounds = array<i64: 1, 32>}, {pipeline_mode = #tpu.pipeline_mode<synchronous>, transform_indices = @transform_6, window_bounds = array<i64: 1, 1>}, {transform_indices = @transform_7, window_bounds = array<i64: 1, 128>}]} {
    %c0 = arith.constant 0 : index
    %c0_0 = arith.constant 0 : index
    %0 = vector.load %arg2[%c0, %c0_0] : memref<32x32xbf16, #tpu.memory_space<vmem>>, vector<32x32xbf16>
    %c0_1 = arith.constant 0 : index
    %c0_2 = arith.constant 0 : index
    %1 = vector.load %arg1[%c0_1, %c0_2] : memref<32x128xbf16, #tpu.memory_space<vmem>>, vector<32x128xbf16>
    %cst = arith.constant dense<0.000000e+00> : vector<32x128xf32>
    %2 = tpu.matmul %0, %1, %cst {dimension_numbers = #tpu.dot_dimension_numbers<[1], [0], [0], [1], [0, 0, 1, 1], [], []>} : vector<32x32xbf16>, vector<32x128xbf16>, vector<32x128xf32> -> vector<32x128xf32>
    %c0_3 = arith.constant 0 : index
    %c0_4 = arith.constant 0 : index
    %3 = vector.load %arg3[%c0_3, %c0_4] : memref<32x1xf32, #tpu.memory_space<vmem>>, vector<32x1xf32>
    %4 = vector.broadcast %3 : vector<32x1xf32> to vector<32x128xf32>
    %5 = arith.addf %2, %4 : vector<32x128xf32>
    %cst_5 = arith.constant 0.000000e+00 : f32
    %6 = vector.broadcast %cst_5 : f32 to vector<32x128xf32>
    %7 = arith.maximumf %5, %6 : vector<32x128xf32>
    %c0_6 = arith.constant 0 : index
    %c0_7 = arith.constant 0 : index
    %c0_8 = arith.constant 0 : index
    %8 = vector.load %arg4[%c0_6, %c0_7, %c0_8] : memref<1x32x32xbf16, #tpu.memory_space<vmem>>, vector<1x32x32xbf16>
    %9 = vector.shape_cast %8 : vector<1x32x32xbf16> to vector<32x32xbf16>
    %10 = arith.truncf %7 : vector<32x128xf32> to vector<32x128xbf16>
    %cst_9 = arith.constant dense<0.000000e+00> : vector<32x128xf32>
    %11 = tpu.matmul %9, %10, %cst_9 {dimension_numbers = #tpu.dot_dimension_numbers<[1], [0], [0], [1], [0, 0, 1, 1], [], []>} : vector<32x32xbf16>, vector<32x128xbf16>, vector<32x128xf32> -> vector<32x128xf32>
    %c0_10 = arith.constant 0 : index
    %c0_11 = arith.constant 0 : index
    %c0_12 = arith.constant 0 : index
    %12 = vector.load %arg5[%c0_10, %c0_11, %c0_12] : memref<1x32x1xf32, #tpu.memory_space<vmem>>, vector<1x32x1xf32>
    %13 = vector.shape_cast %12 : vector<1x32x1xf32> to vector<32x1xf32>
    %14 = vector.broadcast %13 : vector<32x1xf32> to vector<32x128xf32>
    %15 = arith.addf %11, %14 : vector<32x128xf32>
    %cst_13 = arith.constant 0.000000e+00 : f32
    %16 = vector.broadcast %cst_13 : f32 to vector<32x128xf32>
    %17 = arith.maximumf %15, %16 : vector<32x128xf32>
    %c0_14 = arith.constant 0 : index
    %c0_15 = arith.constant 0 : index
    %18 = vector.load %arg6[%c0_14, %c0_15] : memref<1x32xbf16, #tpu.memory_space<vmem>>, vector<1x32xbf16>
    %19 = arith.truncf %17 : vector<32x128xf32> to vector<32x128xbf16>
    %cst_16 = arith.constant dense<0.000000e+00> : vector<1x128xf32>
    %20 = tpu.matmul %18, %19, %cst_16 {dimension_numbers = #tpu.dot_dimension_numbers<[1], [0], [0], [1], [0, 0, 1, 1], [], []>} : vector<1x32xbf16>, vector<32x128xbf16>, vector<1x128xf32> -> vector<1x128xf32>
    %c0_17 = arith.constant 0 : index
    %c0_18 = arith.constant 0 : index
    %21 = vector.load %arg7[%c0_17, %c0_18] : memref<1x1xf32, #tpu.memory_space<vmem>>, vector<1x1xf32>
    %22 = vector.broadcast %21 : vector<1x1xf32> to vector<1x128xf32>
    %23 = arith.addf %20, %22 : vector<1x128xf32>
    %c0_19 = arith.constant 0 : index
    %c0_20 = arith.constant 0 : index
    %24 = vector.load %arg8[%c0_19, %c0_20] : memref<1x128xf32, #tpu.memory_space<vmem>>, vector<1x128xf32>
    tpu.vector_store %arg8[%c0_19, %c0_20], %23 {strides = array<i32>} : memref<1x128xf32, #tpu.memory_space<vmem>>, vector<1x128xf32>,
    return
  }
  func.func @transform_0(%arg0: i32) -> (i32, i32) {
    %c0_i32 = arith.constant 0 : i32
    %c0_i32_0 = arith.constant 0 : i32
    return %c0_i32, %arg0 : i32, i32
  }
  func.func @transform_1(%arg0: i32) -> (i32, i32) {
    %c0_i32 = arith.constant 0 : i32
    %c0_i32_0 = arith.constant 0 : i32
    %c0_i32_1 = arith.constant 0 : i32
    return %c0_i32, %c0_i32_0 : i32, i32
  }
  func.func @transform_2(%arg0: i32) -> (i32, i32) {
    %c0_i32 = arith.constant 0 : i32
    %c0_i32_0 = arith.constant 0 : i32
    %c0_i32_1 = arith.constant 0 : i32
    return %c0_i32, %c0_i32_0 : i32, i32
  }
  func.func @transform_3(%arg0: i32) -> (i32, i32, i32) {
    %c0_i32 = arith.constant 0 : i32
    %c0_i32_0 = arith.constant 0 : i32
    %c0_i32_1 = arith.constant 0 : i32
    %c0_i32_2 = arith.constant 0 : i32
    return %c0_i32, %c0_i32_0, %c0_i32_1 : i32, i32, i32
  }
  func.func @transform_4(%arg0: i32) -> (i32, i32, i32) {
    %c0_i32 = arith.constant 0 : i32
    %c0_i32_0 = arith.constant 0 : i32
    %c0_i32_1 = arith.constant 0 : i32
    %c0_i32_2 = arith.constant 0 : i32
    return %c0_i32, %c0_i32_0, %c0_i32_1 : i32, i32, i32
  }
  func.func @transform_5(%arg0: i32) -> (i32, i32) {
    %c0_i32 = arith.constant 0 : i32
    %c0_i32_0 = arith.constant 0 : i32
    %c0_i32_1 = arith.constant 0 : i32
    return %c0_i32, %c0_i32_0 : i32, i32
  }
  func.func @transform_6(%arg0: i32) -> (i32, i32) {
    %c0_i32 = arith.constant 0 : i32
    %c0_i32_0 = arith.constant 0 : i32
    %c0_i32_1 = arith.constant 0 : i32
    return %c0_i32, %c0_i32_0 : i32, i32
  }
  func.func @transform_7(%arg0: i32) -> (i32, i32) {
    %c0_i32 = arith.constant 0 : i32
    %c0_i32_0 = arith.constant 0 : i32
    return %c0_i32, %arg0 : i32, i32
  }
}

</mosaic_0001>

<llo_original>
// kernel: net_forward.1
$region0: #{net_forward.1}
  #allocation0 [shape = 'u32[]', space=smem, size = 0x4, offset = 0x4, fixed_abs, tag = 'smem constant byte address 0x4 - core index']
  #allocation1 [shape = 'u32[144,128]{1,0:T(1,128)}', space=vmem, size = 0x12000, scoped, tag = 'internal scratch']
  #allocation2 [shape = 'f32[1,1]{1,0:T(1,128)S(1)}', space=vmem, size = 0x200, scoped, tag = 'scoped memory for net_forward.1']
  %s0 = inlined_call_operand.vmem [shape: bf16[32,8], index: 0, kind: input, shape index: {}]
  %s1 = inlined_call_operand.vmem [shape: bf16[32,32], index: 1, kind: input, shape index: {}]
  %s2 = inlined_call_operand.vmem [shape: f32[32,1], index: 2, kind: input, shape index: {}]
  %s3 = inlined_call_operand.vmem [shape: bf16[1,32,32], index: 3, kind: input, shape index: {}]
  %s4 = inlined_call_operand.vmem [shape: f32[1,32,1], index: 4, kind: input, shape index: {}]
  %s5 = inlined_call_operand.vmem [shape: bf16[1,32], index: 5, kind: input, shape index: {}]
  %s6 = inlined_call_operand.<no memory space> [shape: f32[1,1], index: 6, kind: input, shape index: {}]
  %s7 = inlined_call_operand.vmem [shape: f32[1,128], index: 7, kind: output, shape index: {}]
  %s8 = sld [smem:[#allocation0]]
  $region38: #{net_forward.1} parent=0
    _
  %s10 = ssub.s32 1, %s8
  %s11 = scalar_select 0, %s10, %s8
  %v12 = vstv %s6
  %13 = vst [vmem:[#allocation2] sm:$0x1] %v12
  // Predicated region
  $region2: #{net_forward.1} parent=0 // pred_check
    _
  $region3: #{net_forward.1} parent=0 // pred_check_branch
    %15 = sbr.rel (0) target = $region5
  $region4: #{net_forward.1} parent=0 // pred_region
    _
  $region5: #{net_forward.1} parent=0 // pred_fallthru
    _
  // Predicated region
  $region6: #{net_forward.1} parent=0 // pred_check
    _
  $region7: #{net_forward.1} parent=0 // pred_check_branch
    %17 = sbr.rel (0) target = $region9
  $region8: #{net_forward.1} parent=0 // pred_region
    _
  $region9: #{net_forward.1} parent=0 // pred_fallthru
    _
  // Predicated region
  $region10: #{net_forward.1} parent=0 // pred_check
    _
  $region11: #{net_forward.1} parent=0 // pred_check_branch
    %19 = sbr.rel (0) target = $region13
  $region12: #{net_forward.1} parent=0 // pred_region
    _
  $region13: #{net_forward.1} parent=0 // pred_fallthru
    _
  // Predicated region
  $region14: #{net_forward.1} parent=0 // pred_check
    _
  $region15: #{net_forward.1} parent=0 // pred_check_branch
    %21 = sbr.rel (0) target = $region17
  $region16: #{net_forward.1} parent=0 // pred_region
    _
  $region17: #{net_forward.1} parent=0 // pred_fallthru
    _
  // Predicated region
  $region18: #{net_forward.1} parent=0 // pred_check
    _
  $region19: #{net_forward.1} parent=0 // pred_check_branch
    %23 = sbr.rel (0) target = $region21
  $region20: #{net_forward.1} parent=0 // pred_region
    _
  $region21: #{net_forward.1} parent=0 // pred_fallthru
    _
  // Predicated region
  $region22: #{net_forward.1} parent=0 // pred_check
    _
  $region23: #{net_forward.1} parent=0 // pred_check_branch
    %25 = sbr.rel (0) target = $region25
  $region24: #{net_forward.1} parent=0 // pred_region
    _
  $region25: #{net_forward.1} parent=0 // pred_fallthru
    _
  // Predicated region
  $region26: #{net_forward.1} parent=0 // pred_check
    _
  $region27: #{net_forward.1} parent=0 // pred_check_branch
    %27 = sbr.rel (0) target = $region29
  $region28: #{net_forward.1} parent=0 // pred_region
    _
  $region29: #{net_forward.1} parent=0 // pred_fallthru
    _
  %v29 = vld [vmem:[%s1] sm:$0xf]
  %v30 = vld [vmem:[%s1 + $0x4] sm:$0xf]
  %v31 = vld [vmem:[%s1 + $0x8] sm:$0xf]
  %v32 = vld [vmem:[%s1 + $0xc] sm:$0xf]
  %v33 = vld [vmem:[%s0] sm:$0xf]
  %v34 = vld [vmem:[%s0 + $0x4] sm:$0xf]
  %v35 = vld [vmem:[%s0 + $0x8] sm:$0xf]
  %v36 = vld [vmem:[%s0 + $0xc] sm:$0xf]
  %v37 = vld [vmem:[%s2] sm:$0xff]
  %v38 = vld [vmem:[%s2 + $0x8] sm:$0xff]
  %v39 = vld [vmem:[%s2 + $0x10] sm:$0xff]
  %v40 = vld [vmem:[%s2 + $0x18] sm:$0xff]
  %42 = vset.pattern.permute.xlu0 0
  %43 = vperm.xlu0 %42, %v37
  %v44 = vpop.permute.xlu0 %43
  %47 = vset.pattern.permute.xlu0 0
  %48 = vperm.xlu0 %47, %v38
  %v49 = vpop.permute.xlu0 %48
  %52 = vset.pattern.permute.xlu0 0
  %53 = vperm.xlu0 %52, %v39
  %v54 = vpop.permute.xlu0 %53
  %57 = vset.pattern.permute.xlu0 0
  %58 = vperm.xlu0 %57, %v40
  %v59 = vpop.permute.xlu0 %58
  %v65 = vunpack.c.l.b16 %v29
  %v66 = vunpack.c.l.b16 %v30
  %v67 = vunpack.c.l.b16 %v31
  %v68 = vunpack.c.l.b16 %v32
  %v69 = vpack.c.b16 %v66, %v65
  %v70 = vpack.c.b16 %v68, %v67
  %v75 = vunpack.c.l.b16 %v33
  %v76 = vunpack.c.l.b16 %v34
  %v77 = vunpack.c.l.b16 %v35
  %v78 = vunpack.c.l.b16 %v36
  %v79 = vpack.c.b16 %v76, %v75
  %v80 = vpack.c.b16 %v78, %v77
  %vm83 = vcmask 261120
  %v85 = vsel %vm83, %v69, 0
  %v88 = vsel %vm83, %v70, 0
  %90 = vmatprep.subr.bf16.mxu0 0
  %91 = vmatpush1.bf16.msra.mxu0 %v79
  %92 = vmatprep.subr.bf16.mxu0 0
  %93 = vmatpush1.bf16.msra.mxu0 %v80
  %94 = vmatprep.subr.bf16.mxu0 0
  %95 = vmatpush1.bf16.msra.mxu0 0
  %96 = vmatprep.subr.bf16.mxu0 0
  %97 = vmatpush1.bf16.msra.mxu0 0
  %98 = vmatprep.subr.bf16.mxu0 0
  %99 = vmatpush1.bf16.msra.mxu0 0
  %100 = vmatprep.subr.bf16.mxu0 0
  %101 = vmatpush1.bf16.msra.mxu0 0
  %102 = vmatprep.subr.bf16.mxu0 0
  %103 = vmatpush1.bf16.msra.mxu0 0
  %104 = vmatprep.subr.bf16.mxu0 0
  %105 = vmatpush1.bf16.msra.mxu0 0
  %106 = vmatprep.subr.bf16.mxu0 0
  %107 = vmatpush1.bf16.msra.mxu0 0
  %108 = vmatprep.subr.bf16.mxu0 0
  %109 = vmatpush1.bf16.msra.mxu0 0
  %110 = vmatprep.subr.bf16.mxu0 0
  %111 = vmatpush1.bf16.msra.mxu0 0
  %112 = vmatprep.subr.bf16.mxu0 0
  %113 = vmatpush1.bf16.msra.mxu0 0
  %114 = vmatprep.subr.bf16.mxu0 0
  %115 = vmatpush1.bf16.msra.mxu0 0
  %116 = vmatprep.subr.bf16.mxu0 0
  %117 = vmatpush1.bf16.msra.mxu0 0
  %118 = vmatprep.subr.bf16.mxu0 0
  %119 = vmatpush1.bf16.msra.mxu0 0
  %120 = vmatprep.subr.bf16.mxu0 0
  %121 = vmatpush1.bf16.msra.mxu0 0
  %122 = vmatprep.mubr.bf16.mxu0 0
  %123 = vmatmul.mubr.bf16.gmra.mrb[0].mxu0 %v85
  %v124 = vpop.f32.mrb[0].mxu0
  %v125 = vadd.f32 %v44, %v124
  %v126 = vpop.f32.mrb[0].mxu0
  %v127 = vpop.f32.mrb[0].mxu0
  %v128 = vadd.f32 %v49, %v127
  %v129 = vpop.f32.mrb[0].mxu0
  %130 = vmatprep.mubr.bf16.mxu0 0
  %131 = vmatmul.mubr.bf16.gmra.mrb[0].mxu0 %v88
  %v132 = vpop.f32.mrb[0].mxu0
  %v133 = vadd.f32 %v54, %v132
  %v134 = vpop.f32.mrb[0].mxu0
  %v135 = vpop.f32.mrb[0].mxu0
  %v136 = vadd.f32 %v59, %v135
  %v137 = vpop.f32.mrb[0].mxu0
  %138 = vdwg.mxu0
  %v139 = vmax.f32 %v125, 0.0
  %v140 = vmax.f32 %v128, 0.0
  %v141 = vmax.f32 %v133, 0.0
  %v142 = vmax.f32 %v136, 0.0
  %v143 = vld [vmem:[%s3] sm:$0xf]
  %v144 = vld [vmem:[%s3 + $0x4] sm:$0xf]
  %v145 = vld [vmem:[%s3 + $0x8] sm:$0xf]
  %v146 = vld [vmem:[%s3 + $0xc] sm:$0xf]
  %v147 = vpack.c.bf16 %v140, %v139
  %v148 = vpack.c.bf16 %v142, %v141
  %v149 = vld [vmem:[%s4] sm:$0xff]
  %v150 = vld [vmem:[%s4 + $0x8] sm:$0xff]
  %v151 = vld [vmem:[%s4 + $0x10] sm:$0xff]
  %v152 = vld [vmem:[%s4 + $0x18] sm:$0xff]
  %154 = vset.pattern.permute.xlu0 0
  %155 = vperm.xlu0 %154, %v149
  %v156 = vpop.permute.xlu0 %155
  %159 = vset.pattern.permute.xlu0 0
  %160 = vperm.xlu0 %159, %v150
  %v161 = vpop.permute.xlu0 %160
  %164 = vset.pattern.permute.xlu0 0
  %165 = vperm.xlu0 %164, %v151
  %v166 = vpop.permute.xlu0 %165
  %169 = vset.pattern.permute.xlu0 0
  %170 = vperm.xlu0 %169, %v152
  %v171 = vpop.permute.xlu0 %170
  %v177 = vunpack.c.l.b16 %v143
  %v178 = vunpack.c.l.b16 %v144
  %v179 = vunpack.c.l.b16 %v145
  %v180 = vunpack.c.l.b16 %v146
  %v181 = vpack.c.b16 %v178, %v177
  %v182 = vpack.c.b16 %v180, %v179
  %v184 = vsel %vm83, %v181, 0
  %v187 = vsel %vm83, %v182, 0
  %189 = vmatprep.subr.bf16.mxu0 0
  %190 = vmatpush1.bf16.msra.mxu0 %v147
  %191 = vmatprep.subr.bf16.mxu0 0
  %192 = vmatpush1.bf16.msra.mxu0 %v148
  %193 = vmatprep.subr.bf16.mxu0 0
  %194 = vmatpush1.bf16.msra.mxu0 0
  %195 = vmatprep.subr.bf16.mxu0 0
  %196 = vmatpush1.bf16.msra.mxu0 0
  %197 = vmatprep.subr.bf16.mxu0 0
  %198 = vmatpush1.bf16.msra.mxu0 0
  %199 = vmatprep.subr.bf16.mxu0 0
  %200 = vmatpush1.bf16.msra.mxu0 0
  %201 = vmatprep.subr.bf16.mxu0 0
  %202 = vmatpush1.bf16.msra.mxu0 0
  %203 = vmatprep.subr.bf16.mxu0 0
  %204 = vmatpush1.bf16.msra.mxu0 0
  %205 = vmatprep.subr.bf16.mxu0 0
  %206 = vmatpush1.bf16.msra.mxu0 0
  %207 = vmatprep.subr.bf16.mxu0 0
  %208 = vmatpush1.bf16.msra.mxu0 0
  %209 = vmatprep.subr.bf16.mxu0 0
  %210 = vmatpush1.bf16.msra.mxu0 0
  %211 = vmatprep.subr.bf16.mxu0 0
  %212 = vmatpush1.bf16.msra.mxu0 0
  %213 = vmatprep.subr.bf16.mxu0 0
  %214 = vmatpush1.bf16.msra.mxu0 0
  %215 = vmatprep.subr.bf16.mxu0 0
  %216 = vmatpush1.bf16.msra.mxu0 0
  %217 = vmatprep.subr.bf16.mxu0 0
  %218 = vmatpush1.bf16.msra.mxu0 0
  %219 = vmatprep.subr.bf16.mxu0 0
  %220 = vmatpush1.bf16.msra.mxu0 0
  %221 = vmatprep.mubr.bf16.mxu0 0
  %222 = vmatmul.mubr.bf16.gmra.mrb[0].mxu0 %v184
  %v223 = vpop.f32.mrb[0].mxu0
  %v224 = vadd.f32 %v156, %v223
  %v225 = vpop.f32.mrb[0].mxu0
  %v226 = vpop.f32.mrb[0].mxu0
  %v227 = vadd.f32 %v161, %v226
  %v228 = vpop.f32.mrb[0].mxu0
  %229 = vmatprep.mubr.bf16.mxu0 0
  %230 = vmatmul.mubr.bf16.gmra.mrb[0].mxu0 %v187
  %v231 = vpop.f32.mrb[0].mxu0
  %v232 = vadd.f32 %v166, %v231
  %v233 = vpop.f32.mrb[0].mxu0
  %v234 = vpop.f32.mrb[0].mxu0
  %v235 = vadd.f32 %v171, %v234
  %v236 = vpop.f32.mrb[0].mxu0
  %237 = vdwg.mxu0
  %v238 = vmax.f32 %v224, 0.0
  %v239 = vmax.f32 %v227, 0.0
  %v240 = vmax.f32 %v232, 0.0
  %v241 = vmax.f32 %v235, 0.0
  %v242 = vld [vmem:[%s5] sm:$0x1]
  %v243 = vpack.c.bf16 %v239, %v238
  %v244 = vpack.c.bf16 %v241, %v240
  %v245 = vld [vmem:[#allocation2] sm:$0x1]
  %247 = vset.pattern.permute.xlu0 0
  %248 = vperm.xlu0 %247, %v245
  %v249 = vpop.permute.xlu0 %248
  %v251 = vlaneseq
  %v252 = vshrl.u32 %v251, 7
  %v253 = vsub.s32 0, %v252
  %v254 = vrot.slane %v249, %v253
  %v256 = vsel %vm83, %v242, 0
  %258 = vmatprep.subr.bf16.mxu0 0
  %259 = vmatpush1.bf16.msra.mxu0 %v243
  %260 = vmatprep.subr.bf16.mxu0 0
  %261 = vmatpush1.bf16.msra.mxu0 %v244
  %262 = vmatprep.subr.bf16.mxu0 0
  %263 = vmatpush1.bf16.msra.mxu0 0
  %264 = vmatprep.subr.bf16.mxu0 0
  %265 = vmatpush1.bf16.msra.mxu0 0
  %266 = vmatprep.subr.bf16.mxu0 0
  %267 = vmatpush1.bf16.msra.mxu0 0
  %268 = vmatprep.subr.bf16.mxu0 0
  %269 = vmatpush1.bf16.msra.mxu0 0
  %270 = vmatprep.subr.bf16.mxu0 0
  %271 = vmatpush1.bf16.msra.mxu0 0
  %272 = vmatprep.subr.bf16.mxu0 0
  %273 = vmatpush1.bf16.msra.mxu0 0
  %274 = vmatprep.subr.bf16.mxu0 0
  %275 = vmatpush1.bf16.msra.mxu0 0
  %276 = vmatprep.subr.bf16.mxu0 0
  %277 = vmatpush1.bf16.msra.mxu0 0
  %278 = vmatprep.subr.bf16.mxu0 0
  %279 = vmatpush1.bf16.msra.mxu0 0
  %280 = vmatprep.subr.bf16.mxu0 0
  %281 = vmatpush1.bf16.msra.mxu0 0
  %282 = vmatprep.subr.bf16.mxu0 0
  %283 = vmatpush1.bf16.msra.mxu0 0
  %284 = vmatprep.subr.bf16.mxu0 0
  %285 = vmatpush1.bf16.msra.mxu0 0
  %286 = vmatprep.subr.bf16.mxu0 0
  %287 = vmatpush1.bf16.msra.mxu0 0
  %288 = vmatprep.subr.bf16.mxu0 0
  %289 = vmatpush1.bf16.msra.mxu0 0
  %290 = vmatprep.mubr.bf16.mxu0 0
  %291 = vmatmul.mubr.bf16.gmra.mrb[0].mxu0 %v256
  %v292 = vpop.f32.mrb[0].mxu0
  %v293 = vadd.f32 %v254, %v292
  %v294 = vpop.f32.mrb[0].mxu0
  %v295 = vpop.f32.mrb[0].mxu0
  %v296 = vpop.f32.mrb[0].mxu0
  %297 = vdwg.mxu0
  %298 = vst [vmem:[%s7] sm:$0x1] %v293
  // Predicated region
  $region30: #{net_forward.1} parent=0 // pred_check
    _
  $region31: #{net_forward.1} parent=0 // pred_check_branch
    %300 = sbr.rel (0) target = $region33
  $region32: #{net_forward.1} parent=0 // pred_region
    _
  $region33: #{net_forward.1} parent=0 // pred_fallthru
    _
  // Predicated region
  $region34: #{net_forward.1} parent=0 // pred_check
    _
  $region35: #{net_forward.1} parent=0 // pred_check_branch
    %302 = sbr.rel (0) target = $region37
  $region36: #{net_forward.1} parent=0 // pred_region
    _
  $region37: #{net_forward.1} parent=0 // pred_fallthru
    _

</llo_original>
